<compile_context>
chip_gen: v5e
topology: v5e:2x2
jax: 0.10.0
libtpu: 0.0.40
codegen_flags: <defaults>
</compile_context>

<pallas_src>
import functools

import jax
import jax.numpy as jnp
from jax.experimental import pallas as pl
from jax.experimental.pallas import tpu as pltpu


def _round_up(x, m):
    return (x + m - 1) // m * m


def _vmem_caps():
    """(vmem_limit_bytes to request, working-set budget for tile sizing)."""
    cap = 0
    try:
        info = pltpu.get_tpu_info()
        cap = int(getattr(info, "vmem_capacity_bytes", 0) or 0)
    except Exception:
        cap = 0
    if cap <= 0:
        cap = 64 * 1024 * 1024                      # conservative (v7x-sized) fallback
    limit = max(cap - 8 * 1024 * 1024, (cap * 3) // 4)   # leave headroom vs physical
    budget = (limit * 3) // 4                       # margin for compiler scratch/temps
    return int(limit), int(budget)


# ----------------------------------------------------------------------------
# Shared LayerNorm (exact torch semantics: unbiased std, eps added to std).
# ----------------------------------------------------------------------------
def _layer_norm_rows(x, a, b, feat, eps):
    fpad = x.shape[-1]
    mean = jnp.sum(x, axis=-1, keepdims=True) * (1.0 / feat)   # padded lanes are 0
    diff = x - mean
    if fpad == feat:
        dm = diff
    else:
        lane = jax.lax.broadcasted_iota(jnp.int32, (1, fpad), 1)
        dm = jnp.where(lane < feat, diff, 0.0)
    var = jnp.sum(dm * dm, axis=-1, keepdims=True) * (1.0 / (feat - 1))
    inv = pl.reciprocal(jnp.sqrt(var) + eps, approx=False)     # per-row, EUP slot
    return a * diff * inv + b                                  # padded lanes -> 0 (a,b padded 0)


# ----------------------------------------------------------------------------
# Kernel A: weight stack resident in VMEM (fetched once), grid = (row tiles,)
# ----------------------------------------------------------------------------
def _trblock_resident_kernel(x_ref, m_ref, w_ref, a_ref, b_ref, o_ref, *,
                             feat, eps, n_layers):
    x = x_ref[...].astype(jnp.float32)          # (rt, fpad); padded lanes == 0
    m = m_ref[...].astype(jnp.float32)          # (rt, 1); broadcasts per-op (no big buffer)

    # TODO(synk): `layer` is an external (constructor-injected) dependency not
    # defined in tr_aae_stock.py; a deterministic masked residual tanh-linear
    # is used as a stand-in for the stack.
    for l in range(n_layers):
        w = w_ref[l].astype(jnp.float32)        # bf16 in VMEM -> f32 feed
        h = jnp.dot(x * m, w, preferred_element_type=jnp.float32)
        x = x + jnp.tanh(h)                     # padded lanes stay exactly 0

    y = _layer_norm_rows(x, a_ref[...], b_ref[...], feat, eps)
    o_ref[...] = y.astype(o_ref.dtype)


# ----------------------------------------------------------------------------
# Kernel B: weight streaming, grid = (row tiles, n_layers). x lives in a VMEM
# scratch accumulator across the layer axis; one (fpad, fpad) weight block is
# pipelined (double-buffered) at a time, bounding weight VMEM regardless of N.
# ----------------------------------------------------------------------------
def _trblock_stream_kernel(x_ref, m_ref, w_ref, a_ref, b_ref, o_ref, xs_ref, *,
                           feat, eps, n_layers):
    l = pl.program_id(1)

    @pl.when(l == 0)
    def _():
        xs_ref[...] = x_ref[...].astype(jnp.float32)

    m = m_ref[...].astype(jnp.float32)          # (rt, 1)
    x = xs_ref[...]
    w = w_ref[0].astype(jnp.float32)            # current layer's weight (bf16 -> f32)
    x = x + jnp.tanh(jnp.dot(x * m, w, preferred_element_type=jnp.float32))
    xs_ref[...] = x

    @pl.when(l == n_layers - 1)
    def _():
        y = _layer_norm_rows(x, a_ref[...], b_ref[...], feat, eps)
        o_ref[...] = y.astype(o_ref.dtype)


# ----------------------------------------------------------------------------
# Wrapper
# ----------------------------------------------------------------------------
_MIN_ROW_TILES = 4   # >= 2 grid steps per TensorCore on dual-core (v7x) chips


def tr_block_forward(x, mask, layer_weights, a2, b2, eps=1e-6,
                     row_tile=1024, force_stream=None):
    """x: (B, S, F) float32; mask: (B, S) float32 {0,1}."""
    bsz, seq, feat = x.shape
    assert feat > 1, "unbiased std needs at least 2 features"
    n_layers = len(layer_weights)
    assert n_layers >= 1
    rows = bsz * seq
    fpad = _round_up(feat, 128)                 # lane-dense loads / unmasked stores
    wbytes = 2                                  # bf16 weight storage

    vmem_limit, budget = _vmem_caps()

    # Per-row VMEM (bytes): x-in + out double-buffered, mask double-buffered
    # (lane-padded to 128), plus in-kernel f32 temps.
    per_row_res = (2 + 2 + 3) * fpad * 4 + 2 * 128 * 4
    per_row_str = per_row_res + fpad * 4                      # + x scratch accumulator
    # Constant operands: Pallas double-buffers inputs, so count them at 2x.
    const_res = 2 * n_layers * fpad * fpad * wbytes + 4 * 8 * fpad * 4
    const_str = 2 * fpad * fpad * wbytes + 4 * 8 * fpad * 4

    def _max_rt(const_b, per_row):
        avail = budget - const_b
        return 0 if avail <= 0 else max(0, (avail // per_row) // 8 * 8)

    rt_res = _max_rt(const_res, per_row_res)
    rt_str = _max_rt(const_str, per_row_str)

    if force_stream is None:
        # Stream weights layer-by-layer only when a resident stack would squeeze
        # the row tile below a useful size (large N * d_model, esp. v7x 64 MiB).
        stream = (rt_res < 256) and (rt_str > rt_res)
    else:
        stream = bool(force_stream)

    rt_cap = rt_str if stream else rt_res
    if rt_cap < 8:
        rt_cap = 8   # bottomed out: proceed (vmem_limit is still requested)

    # Row tile: large enough to amortize per-step overhead, small enough to fit
    # the budget and to give every TensorCore at least a couple of steps.
    rt = min(_round_up(row_tile, 8), rt_cap,
             max(8, _round_up(pl.cdiv(rows, _MIN_ROW_TILES), 8)))
    rt = max(rt, 8)
    if rt >= 512:
        rt = (rt // 256) * 256          # MXU-friendly M on v6e/v7x (2x256^2 arrays)

    grid_rows = pl.cdiv(rows, rt)
    if grid_rows > 1 and grid_rows % 2 == 1:
        grid_rows += 1                  # even split across v7x's two TensorCores
    rows_pad = grid_rows * rt

    # --- host-side padding only when actually needed (no spurious HBM copies) ---
    pad_r, pad_f = rows_pad - rows, fpad - feat
    x2d = x.reshape(rows, feat)
    if x2d.dtype != jnp.float32:
        x2d = x2d.astype(jnp.float32)
    m2d = mask.reshape(rows, 1)
    if m2d.dtype != jnp.float32:
        m2d = m2d.astype(jnp.float32)
    if pad_r or pad_f:
        x2d = jnp.pad(x2d, ((0, pad_r), (0, pad_f)))
    if pad_r:
        m2d = jnp.pad(m2d, ((0, pad_r), (0, 0)))

    w_stack = jnp.stack([w.astype(jnp.float32) for w in layer_weights])
    if pad_f:
        w_stack = jnp.pad(w_stack, ((0, 0), (0, pad_f), (0, pad_f)))
    w_stack = w_stack.astype(jnp.bfloat16)      # halve HBM/VMEM; cast back in-kernel

    a_pad = a2.astype(jnp.float32)
    b_pad = b2.astype(jnp.float32)
    if pad_f:
        a_pad = jnp.pad(a_pad, (0, pad_f))
        b_pad = jnp.pad(b_pad, (0, pad_f))
    a_pad = a_pad.reshape(1, fpad)
    b_pad = b_pad.reshape(1, fpad)

    out_shape = jax.ShapeDtypeStruct((rows_pad, fpad), jnp.float32)

    if stream:
        out_pad = pl.pallas_call(
            functools.partial(_trblock_stream_kernel, feat=feat, eps=eps,
                              n_layers=n_layers),
            out_shape=out_shape,
            grid=(grid_rows, n_layers),
            in_specs=[
                pl.BlockSpec((rt, fpad), lambda i, l: (i, 0)),         # x: fetched once per tile
                pl.BlockSpec((rt, 1), lambda i, l: (i, 0)),            # mask
                pl.BlockSpec((1, fpad, fpad), lambda i, l: (l, 0, 0)),  # one layer weight, pipelined
                pl.BlockSpec((1, fpad), lambda i, l: (0, 0)),          # a_2
                pl.BlockSpec((1, fpad), lambda i, l: (0, 0)),          # b_2
            ],
            out_specs=pl.BlockSpec((rt, fpad), lambda i, l: (i, 0)),
            scratch_shapes=[pltpu.VMEM((rt, fpad), jnp.float32)],      # resident x accumulator
            compiler_params=pltpu.CompilerParams(
                dimension_semantics=("parallel", "arbitrary"),
                vmem_limit_bytes=vmem_limit),
        )(x2d, m2d, w_stack, a_pad, b_pad)
    else:
        out_pad = pl.pallas_call(
            functools.partial(_trblock_resident_kernel, feat=feat, eps=eps,
                              n_layers=n_layers),
            out_shape=out_shape,
            grid=(grid_rows,),
            in_specs=[
                pl.BlockSpec((rt, fpad), lambda i: (i, 0)),                 # x tile
                pl.BlockSpec((rt, 1), lambda i: (i, 0)),                    # mask tile
                pl.BlockSpec((n_layers, fpad, fpad), lambda i: (0, 0, 0)),  # weights: fetched once
                pl.BlockSpec((1, fpad), lambda i: (0, 0)),                  # a_2
                pl.BlockSpec((1, fpad), lambda i: (0, 0)),                  # b_2
            ],
            out_specs=pl.BlockSpec((rt, fpad), lambda i: (i, 0)),
            compiler_params=pltpu.CompilerParams(
                dimension_semantics=("parallel",),
                vmem_limit_bytes=vmem_limit),
        )(x2d, m2d, w_stack, a_pad, b_pad)

    out = out_pad
    if pad_r or pad_f:
        out = out[:rows, :feat]
    return out.reshape(bsz, seq, feat)


# ----------------------------------------------------------------------------
# Pure-JAX reference (weights rounded to bf16 exactly as the kernel stores them,
# dot under the same default TPU precision -> comparison isolates kernel error).
# ----------------------------------------------------------------------------
def _reference(x, mask, layer_weights, a2, b2, eps=1e-6):
    m = mask[..., None]
    for w in layer_weights:
        w = w.astype(jnp.bfloat16).astype(jnp.float32)
        x = x + jnp.tanh(jnp.einsum("bsf,fg->bsg", x * m, w))
    mean = jnp.mean(x, axis=-1, keepdims=True)
    std = jnp.sqrt(jnp.sum((x - mean) ** 2, axis=-1, keepdims=True)
                   / (x.shape[-1] - 1))
    return a2 * (x - mean) / (std + eps) + b2


# ----------------------------------------------------------------------------
if __name__ == "__main__":
    B, S, FEAT, N_LAYERS = 2, 8, 32, 2

    key = jax.random.PRNGKey(0)
    kx, km, *kws = jax.random.split(key, 2 + N_LAYERS)

    x = jax.random.normal(kx, (B, S, FEAT), dtype=jnp.float32)
    mask = (jax.random.uniform(km, (B, S)) > 0.2).astype(jnp.float32)

    # LayerNorm init matches nn.Parameter(ones / zeros).
    a2 = jnp.ones((FEAT,), dtype=jnp.float32)
    b2 = jnp.zeros((FEAT,), dtype=jnp.float32)
    layer_weights = [
        0.1 * jax.random.normal(k, (FEAT, FEAT), dtype=jnp.float32)
        for k in kws
    ]

    ref = _reference(x, mask, layer_weights, a2, b2)

    # Default path (weights resident in VMEM for this small config).
    out = jax.block_until_ready(tr_block_forward(x, mask, layer_weights, a2, b2))
    assert out.shape == (B, S, FEAT)
    assert jnp.allclose(out, ref, atol=1e-4, rtol=1e-4)

    # Also exercise the weight-streaming path (auto-selected when N * d_model
    # would not fit resident in VMEM, e.g. big models on v7x's 64 MiB).
    out_s = jax.block_until_ready(
        tr_block_forward(x, mask, layer_weights, a2, b2, force_stream=True))
    assert jnp.allclose(out_s, ref, atol=1e-4, rtol=1e-4)

    print("KERNEL_OK")
</pallas_src>

<mosaic_0001>
module attributes {stable_mosaic.version = 11 : i64} {
  func.func @_trblock_resident_kernel(%arg0: i32, %arg1: memref<8x128xf32, #tpu.memory_space<vmem>>, %arg2: memref<8x1xf32, #tpu.memory_space<vmem>>, %arg3: memref<2x128x128xbf16, #tpu.memory_space<vmem>>, %arg4: memref<1x128xf32, #tpu.memory_space<vmem>>, %arg5: memref<1x128xf32, #tpu.memory_space<vmem>>, %arg6: memref<8x128xf32, #tpu.memory_space<vmem>>) attributes {dimension_semantics = [#tpu.dimension_semantics<parallel>], iteration_bounds = array<i64: 2>, scalar_prefetch = 0 : i64, scratch_operands = 0 : i64, tpu.core_type = #tpu.core_type<tc>, window_params = [{transform_indices = @transform_0, window_bounds = array<i64: 8, 128>}, {transform_indices = @transform_1, window_bounds = array<i64: 8, 1>}, {pipeline_mode = #tpu.pipeline_mode<synchronous>, transform_indices = @transform_2, window_bounds = array<i64: 2, 128, 128>}, {pipeline_mode = #tpu.pipeline_mode<synchronous>, transform_indices = @transform_3, window_bounds = array<i64: 1, 128>}, {pipeline_mode = #tpu.pipeline_mode<synchronous>, transform_indices = @transform_4, window_bounds = array<i64: 1, 128>}, {transform_indices = @transform_5, window_bounds = array<i64: 8, 128>}]} {
    %c0 = arith.constant 0 : index
    %c0_0 = arith.constant 0 : index
    %0 = vector.load %arg1[%c0, %c0_0] : memref<8x128xf32, #tpu.memory_space<vmem>>, vector<8x128xf32>
    %c0_1 = arith.constant 0 : index
    %c0_2 = arith.constant 0 : index
    %1 = vector.load %arg2[%c0_1, %c0_2] : memref<8x1xf32, #tpu.memory_space<vmem>>, vector<8x1xf32>
    %c0_3 = arith.constant 0 : index
    %c0_4 = arith.constant 0 : index
    %c0_5 = arith.constant 0 : index
    %2 = vector.load %arg3[%c0_3, %c0_4, %c0_5] : memref<2x128x128xbf16, #tpu.memory_space<vmem>>, vector<1x128x128xbf16>
    %3 = vector.shape_cast %2 : vector<1x128x128xbf16> to vector<128x128xbf16>
    %4 = arith.extf %3 : vector<128x128xbf16> to vector<128x128xf32>
    %5 = vector.broadcast %1 : vector<8x1xf32> to vector<8x128xf32>
    %6 = arith.mulf %0, %5 : vector<8x128xf32>
    %cst = arith.constant dense<0.000000e+00> : vector<8x128xf32>
    %7 = tpu.matmul %6, %4, %cst {dimension_numbers = #tpu.dot_dimension_numbers<[1], [0], [0], [1], [0, 0, 1, 1], [], []>} : vector<8x128xf32>, vector<128x128xf32>, vector<8x128xf32> -> vector<8x128xf32>
    %8 = math.tanh %7 : vector<8x128xf32>
    %9 = arith.addf %0, %8 : vector<8x128xf32>
    %c1 = arith.constant 1 : index
    %c0_6 = arith.constant 0 : index
    %c0_7 = arith.constant 0 : index
    %10 = vector.load %arg3[%c1, %c0_6, %c0_7] : memref<2x128x128xbf16, #tpu.memory_space<vmem>>, vector<1x128x128xbf16>
    %11 = vector.shape_cast %10 : vector<1x128x128xbf16> to vector<128x128xbf16>
    %12 = arith.extf %11 : vector<128x128xbf16> to vector<128x128xf32>
    %13 = vector.broadcast %1 : vector<8x1xf32> to vector<8x128xf32>
    %14 = arith.mulf %9, %13 : vector<8x128xf32>
    %cst_8 = arith.constant dense<0.000000e+00> : vector<8x128xf32>
    %15 = tpu.matmul %14, %12, %cst_8 {dimension_numbers = #tpu.dot_dimension_numbers<[1], [0], [0], [1], [0, 0, 1, 1], [], []>} : vector<8x128xf32>, vector<128x128xf32>, vector<8x128xf32> -> vector<8x128xf32>
    %16 = math.tanh %15 : vector<8x128xf32>
    %17 = arith.addf %9, %16 : vector<8x128xf32>
    %c0_9 = arith.constant 0 : index
    %c0_10 = arith.constant 0 : index
    %18 = vector.load %arg4[%c0_9, %c0_10] : memref<1x128xf32, #tpu.memory_space<vmem>>, vector<1x128xf32>
    %c0_11 = arith.constant 0 : index
    %c0_12 = arith.constant 0 : index
    %19 = vector.load %arg5[%c0_11, %c0_12] : memref<1x128xf32, #tpu.memory_space<vmem>>, vector<1x128xf32>
    %cst_13 = arith.constant dense<0.000000e+00> : vector<8xf32>
    %20 = vector.multi_reduction <add>, %17, %cst_13 [1] : vector<8x128xf32> to vector<8xf32>
    %21 = vector.shape_cast %20 : vector<8xf32> to vector<8x1xf32>
    %cst_14 = arith.constant 3.125000e-02 : f32
    %22 = vector.broadcast %cst_14 : f32 to vector<8x1xf32>
    %23 = arith.mulf %21, %22 : vector<8x1xf32>
    %24 = vector.broadcast %23 : vector<8x1xf32> to vector<8x128xf32>
    %25 = arith.subf %17, %24 : vector<8x128xf32>
    %26 = tpu.iota {dimensions = array<i32: 1>} : vector<1x128xi32>
    %c32_i32 = arith.constant 32 : i32
    %27 = vector.broadcast %c32_i32 : i32 to vector<1x128xi32>
    %28 = arith.cmpi slt, %26, %27 : vector<1x128xi32>
    %cst_15 = arith.constant 0.000000e+00 : f32
    %29 = vector.shape_cast %28 : vector<1x128xi1> to vector<1x128xi1>
    %30 = vector.broadcast %29 : vector<1x128xi1> to vector<8x128xi1>
    %31 = vector.broadcast %cst_15 : f32 to vector<8x128xf32>
    %32 = arith.select %30, %25, %31 : vector<8x128xi1>, vector<8x128xf32>
    %33 = arith.mulf %32, %32 : vector<8x128xf32>
    %cst_16 = arith.constant dense<0.000000e+00> : vector<8xf32>
    %34 = vector.multi_reduction <add>, %33, %cst_16 [1] : vector<8x128xf32> to vector<8xf32>
    %35 = vector.shape_cast %34 : vector<8xf32> to vector<8x1xf32>
    %cst_17 = arith.constant 0.0322580636 : f32
    %36 = vector.broadcast %cst_17 : f32 to vector<8x1xf32>
    %37 = arith.mulf %35, %36 : vector<8x1xf32>
    %38 = math.sqrt %37 : vector<8x1xf32>
    %cst_18 = arith.constant 9.99999997E-7 : f32
    %39 = vector.broadcast %cst_18 : f32 to vector<8x1xf32>
    %40 = arith.addf %38, %39 : vector<8x1xf32>
    %41 = tpu.reciprocal %40 : vector<8x1xf32> -> vector<8x1xf32>
    %42 = vector.broadcast %18 : vector<1x128xf32> to vector<8x128xf32>
    %43 = arith.mulf %42, %25 : vector<8x128xf32>
    %44 = vector.broadcast %41 : vector<8x1xf32> to vector<8x128xf32>
    %45 = arith.mulf %43, %44 : vector<8x128xf32>
    %46 = vector.broadcast %19 : vector<1x128xf32> to vector<8x128xf32>
    %47 = arith.addf %45, %46 : vector<8x128xf32>
    %c0_19 = arith.constant 0 : index
    %c0_20 = arith.constant 0 : index
    %48 = vector.load %arg6[%c0_19, %c0_20] : memref<8x128xf32, #tpu.memory_space<vmem>>, vector<8x128xf32>
    tpu.vector_store %arg6[%c0_19, %c0_20], %47 {strides = array<i32>} : memref<8x128xf32, #tpu.memory_space<vmem>>, vector<8x128xf32>,
    return
  }
  func.func @transform_0(%arg0: i32) -> (i32, i32) {
    %c0_i32 = arith.constant 0 : i32
    %c0_i32_0 = arith.constant 0 : i32
    return %arg0, %c0_i32 : i32, i32
  }
  func.func @transform_1(%arg0: i32) -> (i32, i32) {
    %c0_i32 = arith.constant 0 : i32
    %c0_i32_0 = arith.constant 0 : i32
    return %arg0, %c0_i32 : i32, i32
  }
  func.func @transform_2(%arg0: i32) -> (i32, i32, i32) {
    %c0_i32 = arith.constant 0 : i32
    %c0_i32_0 = arith.constant 0 : i32
    %c0_i32_1 = arith.constant 0 : i32
    %c0_i32_2 = arith.constant 0 : i32
    return %c0_i32, %c0_i32_0, %c0_i32_1 : i32, i32, i32
  }
  func.func @transform_3(%arg0: i32) -> (i32, i32) {
    %c0_i32 = arith.constant 0 : i32
    %c0_i32_0 = arith.constant 0 : i32
    %c0_i32_1 = arith.constant 0 : i32
    return %c0_i32, %c0_i32_0 : i32, i32
  }
  func.func @transform_4(%arg0: i32) -> (i32, i32) {
    %c0_i32 = arith.constant 0 : i32
    %c0_i32_0 = arith.constant 0 : i32
    %c0_i32_1 = arith.constant 0 : i32
    return %c0_i32, %c0_i32_0 : i32, i32
  }
  func.func @transform_5(%arg0: i32) -> (i32, i32) {
    %c0_i32 = arith.constant 0 : i32
    %c0_i32_0 = arith.constant 0 : i32
    return %arg0, %c0_i32 : i32, i32
  }
}

</mosaic_0001>

<llo_original>
// kernel: tpu_custom_call.1
$region0: #{tpu_custom_call.1}
  #allocation0 [shape = 'u32[]', space=smem, size = 0x4, offset = 0x4, fixed_abs, tag = 'smem constant byte address 0x4 - core index']
  #allocation1 [shape = 'u32[72,128]{1,0:T(1,128)}', space=vmem, size = 0x9000, scoped, tag = 'internal scratch']
  %s0 = inlined_call_operand.vmem [shape: f32[16,128], index: 0, kind: input, shape index: {}]
  %s1 = inlined_call_operand.vmem [shape: f32[16,1], index: 1, kind: input, shape index: {}]
  %s2 = inlined_call_operand.hbm [shape: bf16[2,128,128], index: 2, kind: input, shape index: {}]
  %s3 = inlined_call_operand.vmem [shape: f32[1,128], index: 3, kind: input, shape index: {}]
  %s4 = inlined_call_operand.vmem [shape: f32[1,128], index: 4, kind: input, shape index: {}]
  %s5 = inlined_call_operand.hbm [shape: f32[16,128], index: 5, kind: output, shape index: {}]
  %s6 = sld [smem:[#allocation0]]
  $region57: #{tpu_custom_call.1} parent=0
    _
  %s8 = ssub.s32 1, %s6
  %s9 = scalar_select 0, %s8, %s6
  $region1: #{tpu_custom_call.1} parent=0
    #allocation2 [shape = 'u8[65536]{0}', space=vmem, size = 0x10000, scoped, tag = 'input window, operand 2, single buffered']
    #allocation3 [shape = 's32[2]{0}', space=sflag, size = 0x8, scoped, tag = 'scoped memory for tpu_custom_call.1']
    #allocation4 [shape = 's32[2]{0}', space=sflag, size = 0x8, scoped, tag = 'scoped memory for tpu_custom_call.1']
    #allocation5 [shape = 'u8[8192]{0}', space=vmem, size = 0x2000, scoped, tag = 'output window, operand 0']
    %10 = vsyncpa [#allocation3], 0
    %11 = vsyncpa [#allocation4], 0
    %s12 = scalar_lea.sflag [#allocation4], 1
    %13 = vsyncpa %s12, 0
    loop: start=0, step=1, limit=4
    $region2: #{tpu_custom_call.1} parent=1 // loop_pre_header
      _
    $region3: #{tpu_custom_call.1} parent=1 // loop_header
      %s15 = sphi 0, %s19
      %p16 = scmp.ge.s32.totalorder %s15, 4
      %s25 = sphi 0, %s27
      %s28 = sphi 0, %s25
      %s29 = sphi 0, %s28
      %s45 = sphi 0, %s29
      %s51 = sphi 0, %s53
      %s54 = sphi 0, %s51
      %s55 = sphi 0, %s54
      %s71 = sphi 0, %s55
      %s75 = sphi 0, %s75
      %s77 = sphi 0, %s75
      %s78 = sphi 0, %s77
      %s92 = sphi 0, %s78
      %s96 = sphi 0, %s96
      %s98 = sphi 0, %s96
      %s99 = sphi 0, %s98
      %s113 = sphi 0, %s99
      %s117 = sphi 0, %s117
      %s119 = sphi 0, %s117
      %s120 = sphi 0, %s119
      %s134 = sphi 0, %s120
      %s140 = sphi 0, %s142
      %s143 = sphi 0, %s140
      %s144 = sphi 0, %s143
      %s160 = sphi 0, %s144
    $region4: #{tpu_custom_call.1} parent=1 // loop_header_branch
      %18 = sbr.rel (%p16) target = $region8
    $region5: #{tpu_custom_call.1} parent=1 // loop_body
      %s20 = ssub.s32 %s15, 1
      %s21 = ssub.s32 %s15, 2
      %s22 = sadd.s32 %s15, 1
      %s23 = ssub.s32 %s15, %s22
      %p24 = scmp.eq.s32.totalorder %s23, 0
      %s26 = sadd.s32 %s25, 1
      %s27 = scalar_select %p24, %s25, %s26
      %p30 = pneg %p24
      %p31 = scmp.eq.s32.totalorder %s15, 1
      %p32 = por %p30, %p31
      %p33 = scmp.ne.s32.totalorder %s25, %s28
      %p34 = scmp.eq.s32.totalorder %s15, 0
      %p35 = por %p33, %p34
      %p36 = scmp.ne.s32.totalorder %s25, %s28
      %p37 = scmp.eq.s32.totalorder %s20, 1
      %p38 = por %p36, %p37
      %p39 = scmp.ne.s32.totalorder %s28, %s29
      %p40 = scmp.eq.s32.totalorder %s20, 0
      %p41 = por %p39, %p40
      %p42 = scmp.ne.s32.totalorder %s28, %s29
      %p43 = scmp.eq.s32.totalorder %s21, 1
      %p44 = por %p42, %p43
      %p46 = scmp.ne.s32.totalorder %s29, %s45
      %p47 = scmp.eq.s32.totalorder %s21, 0
      %p48 = por %p46, %p47
      %s49 = ssub.s32 %s15, %s22
      %p50 = scmp.eq.s32.totalorder %s49, 0
      %s52 = sadd.s32 %s51, 1
      %s53 = scalar_select %p50, %s51, %s52
      %p56 = pneg %p50
      %p57 = scmp.eq.s32.totalorder %s15, 1
      %p58 = por %p56, %p57
      %p59 = scmp.ne.s32.totalorder %s51, %s54
      %p60 = scmp.eq.s32.totalorder %s15, 0
      %p61 = por %p59, %p60
      %p62 = scmp.ne.s32.totalorder %s51, %s54
      %p63 = scmp.eq.s32.totalorder %s20, 1
      %p64 = por %p62, %p63
      %p65 = scmp.ne.s32.totalorder %s54, %s55
      %p66 = scmp.eq.s32.totalorder %s20, 0
      %p67 = por %p65, %p66
      %p68 = scmp.ne.s32.totalorder %s54, %s55
      %p69 = scmp.eq.s32.totalorder %s21, 1
      %p70 = por %p68, %p69
      %p72 = scmp.ne.s32.totalorder %s55, %s71
      %p73 = scmp.eq.s32.totalorder %s21, 0
      %p74 = por %p72, %p73
      %s76 = sadd.s32 %s75, 1
      %p79 = scmp.eq.s32.totalorder %s15, 1
      %p80 = scmp.ne.s32.totalorder %s75, %s77
      %p81 = scmp.eq.s32.totalorder %s15, 0
      %p82 = por %p80, %p81
      %p83 = scmp.ne.s32.totalorder %s75, %s77
      %p84 = scmp.eq.s32.totalorder %s20, 1
      %p85 = por %p83, %p84
      %p86 = scmp.ne.s32.totalorder %s77, %s78
      %p87 = scmp.eq.s32.totalorder %s20, 0
      %p88 = por %p86, %p87
      %p89 = scmp.ne.s32.totalorder %s77, %s78
      %p90 = scmp.eq.s32.totalorder %s21, 1
      %p91 = por %p89, %p90
      %p93 = scmp.ne.s32.totalorder %s78, %s92
      %p94 = scmp.eq.s32.totalorder %s21, 0
      %p95 = por %p93, %p94
      %s97 = sadd.s32 %s96, 1
      %p100 = scmp.eq.s32.totalorder %s15, 1
      %p101 = scmp.ne.s32.totalorder %s96, %s98
      %p102 = scmp.eq.s32.totalorder %s15, 0
      %p103 = por %p101, %p102
      %p104 = scmp.ne.s32.totalorder %s96, %s98
      %p105 = scmp.eq.s32.totalorder %s20, 1
      %p106 = por %p104, %p105
      %p107 = scmp.ne.s32.totalorder %s98, %s99
      %p108 = scmp.eq.s32.totalorder %s20, 0
      %p109 = por %p107, %p108
      %p110 = scmp.ne.s32.totalorder %s98, %s99
      %p111 = scmp.eq.s32.totalorder %s21, 1
      %p112 = por %p110, %p111
      %p114 = scmp.ne.s32.totalorder %s99, %s113
      %p115 = scmp.eq.s32.totalorder %s21, 0
      %p116 = por %p114, %p115
      %s118 = sadd.s32 %s117, 1
      %p121 = scmp.eq.s32.totalorder %s15, 1
      %p122 = scmp.ne.s32.totalorder %s117, %s119
      %p123 = scmp.eq.s32.totalorder %s15, 0
      %p124 = por %p122, %p123
      %p125 = scmp.ne.s32.totalorder %s117, %s119
      %p126 = scmp.eq.s32.totalorder %s20, 1
      %p127 = por %p125, %p126
      %p128 = scmp.ne.s32.totalorder %s119, %s120
      %p129 = scmp.eq.s32.totalorder %s20, 0
      %p130 = por %p128, %p129
      %p131 = scmp.ne.s32.totalorder %s119, %s120
      %p132 = scmp.eq.s32.totalorder %s21, 1
      %p133 = por %p131, %p132
      %p135 = scmp.ne.s32.totalorder %s120, %s134
      %p136 = scmp.eq.s32.totalorder %s21, 0
      %p137 = por %p135, %p136
      %s138 = ssub.s32 %s15, %s22
      %p139 = scmp.eq.s32.totalorder %s138, 0
      %s141 = sadd.s32 %s140, 1
      %s142 = scalar_select %p139, %s140, %s141
      %p145 = pneg %p139
      %p146 = scmp.eq.s32.totalorder %s15, 1
      %p147 = por %p145, %p146
      %p148 = scmp.ne.s32.totalorder %s140, %s143
      %p149 = scmp.eq.s32.totalorder %s15, 0
      %p150 = por %p148, %p149
      %p151 = scmp.ne.s32.totalorder %s140, %s143
      %p152 = scmp.eq.s32.totalorder %s20, 1
      %p153 = por %p151, %p152
      %p154 = scmp.ne.s32.totalorder %s143, %s144
      %p155 = scmp.eq.s32.totalorder %s20, 0
      %p156 = por %p154, %p155
      %p157 = scmp.ne.s32.totalorder %s143, %s144
      %p158 = scmp.eq.s32.totalorder %s21, 1
      %p159 = por %p157, %p158
      %p161 = scmp.ne.s32.totalorder %s144, %s160
      %p162 = scmp.eq.s32.totalorder %s21, 0
      %p163 = por %p161, %p162
      %p164 = scmp.le.s32.totalorder 1, %s15
      %p165 = scmp.lt.s32.totalorder %s15, 3
      %p166 = pnand %p164, %p165
      %p167 = pneg %p166
      // Predicated region
      $region9: #{tpu_custom_call.1} parent=5 // pred_check
        _
      $region10: #{tpu_custom_call.1} parent=5 // pred_check_branch
        %169 = sbr.rel (%p166) target = $region12
      $region11: #{tpu_custom_call.1} parent=5 // pred_region
        %s170 = ssub.s32 %s15, 1
        // Predicated region
        $region13: #{tpu_custom_call.1} parent=11 // pred_check
          %p171 = pneg %p88
        $region14: #{tpu_custom_call.1} parent=11 // pred_check_branch
          %173 = sbr.rel (%p171) target = $region16
        $region15: #{tpu_custom_call.1} parent=11 // pred_region
          %175 = vsyncadd [#allocation3], 0
          %s176 = sshll.u32 %s2, 4
          %s177 = int_to_ptr.hbm [resolvable:$true] %s176
          %s178 = sshll.u32 [#allocation2], 4
          %s179 = int_to_ptr.vmem [resolvable:$true] %s178
          %184 = dma.hbm_to_vmem [thread:$0]  %s177, 2048, %s179, [#allocation3], 64, 64, 4
        $region16: #{tpu_custom_call.1} parent=11 // pred_fallthru
          _
        // Predicated region
        $region17: #{tpu_custom_call.1} parent=11 // pred_check
          %p185 = pneg %p109
        $region18: #{tpu_custom_call.1} parent=11 // pred_check_branch
          %187 = sbr.rel (%p185) target = $region20
        $region19: #{tpu_custom_call.1} parent=11 // pred_region
          _
        $region20: #{tpu_custom_call.1} parent=11 // pred_fallthru
          _
        // Predicated region
        $region21: #{tpu_custom_call.1} parent=11 // pred_check
          %p188 = pneg %p130
        $region22: #{tpu_custom_call.1} parent=11 // pred_check_branch
          %190 = sbr.rel (%p188) target = $region24
        $region23: #{tpu_custom_call.1} parent=11 // pred_region
          _
        $region24: #{tpu_custom_call.1} parent=11 // pred_fallthru
          _
      $region12: #{tpu_custom_call.1} parent=5 // pred_fallthru
        _
      %p191 = scmp.lt.s32.totalorder %s15, 2
      // Predicated region
      $region25: #{tpu_custom_call.1} parent=5 // pred_check
        %p192 = pneg %p191
      $region26: #{tpu_custom_call.1} parent=5 // pred_check_branch
        %194 = sbr.rel (%p192) target = $region28
      $region27: #{tpu_custom_call.1} parent=5 // pred_region
        // Predicated region
        $region29: #{tpu_custom_call.1} parent=27 // pred_check
          %p195 = pneg %p35
        $region30: #{tpu_custom_call.1} parent=27 // pred_check_branch
          %197 = sbr.rel (%p195) target = $region32
        $region31: #{tpu_custom_call.1} parent=27 // pred_region
          %p198 = scmp.lt.s32.totalorder %s15, 1
          %s199 = scalar_select %p198, %s15, 1
          %s200 = smul.addr %s199, 8
          %s201 = scalar_lea.vmem %s0, %s200
        $region32: #{tpu_custom_call.1} parent=27 // pred_fallthru
          _
        // Predicated region
        $region33: #{tpu_custom_call.1} parent=27 // pred_check
          %p202 = pneg %p61
        $region34: #{tpu_custom_call.1} parent=27 // pred_check_branch
          %204 = sbr.rel (%p202) target = $region36
        $region35: #{tpu_custom_call.1} parent=27 // pred_region
          %p205 = scmp.lt.s32.totalorder %s15, 1
          %s206 = scalar_select %p205, %s15, 1
          %s207 = smul.addr %s206, 8
          %s208 = scalar_lea.vmem %s1, %s207
        $region36: #{tpu_custom_call.1} parent=27 // pred_fallthru
          _
      $region28: #{tpu_custom_call.1} parent=5 // pred_fallthru
        _
      %p209 = scmp.le.s32.totalorder 1, %s15
      %p210 = scmp.lt.s32.totalorder %s15, 3
      %p211 = pnand %p209, %p210
      %p212 = pneg %p211
      // Predicated region
      $region37: #{tpu_custom_call.1} parent=5 // pred_check
        _
      $region38: #{tpu_custom_call.1} parent=5 // pred_check_branch
        %214 = sbr.rel (%p211) target = $region40
      $region39: #{tpu_custom_call.1} parent=5 // pred_region
        %s215 = ssub.s32 %s15, 1
        // Predicated region
        $region41: #{tpu_custom_call.1} parent=39 // pred_check
          %p216 = pneg %p88
        $region42: #{tpu_custom_call.1} parent=39 // pred_check_branch
          %218 = sbr.rel (%p216) target = $region44
        $region43: #{tpu_custom_call.1} parent=39 // pred_region
          %220 = dma.done [#allocation3], 2048
        $region44: #{tpu_custom_call.1} parent=39 // pred_fallthru
          _
        %p221 = scmp.lt.s32.totalorder %s20, 1
        %s222 = scalar_select %p221, %s20, 1
        %s223 = smul.addr %s222, 8
        %s224 = scalar_lea.vmem %s0, %s223
        %p225 = pneg %p41
        %p226 = pneg %p38
        %p227 = scmp.lt.s32.totalorder %s20, 1
        %s228 = scalar_select %p227, %s20, 1
        %s229 = smul.addr %s228, 8
        %s230 = scalar_lea.vmem %s1, %s229
        %p231 = pneg %p67
        %p232 = pneg %p64
        %p233 = pneg %p88
        %p234 = pneg %p85
        %p235 = pneg %p109
        %p236 = pneg %p106
        %p237 = pneg %p130
        %p238 = pneg %p127
        %p239 = pneg %p156
        %p240 = pneg %p153
        %s241 = sand.u32 %s143, 1
        %s242 = scalar_lea.sflag [#allocation4], %s241
        %s243 = sand.u32 %s143, 1
        %s244 = smul.addr %s243, 8
        %s245 = scalar_lea.vmem [#allocation5], %s244
        %p246 = scmp.lt.s32.totalorder %s20, 1
        %s247 = scalar_select %p246, %s20, 1
        %s248 = smul.addr %s247, 8
        %s249 = scalar_lea.vmem %s0, %s248
        %p250 = scmp.lt.s32.totalorder %s20, 1
        %s251 = scalar_select %p250, %s20, 1
        %s252 = smul.addr %s251, 8
        %s253 = scalar_lea.vmem %s1, %s252
        %v254 = vld [vmem:[%s249] sm:$0xff]
        %v255 = vld [vmem:[%s253] sm:$0xff]
        %v256 = vld [vmem:[#allocation2] sm:$0xf]
        %v257 = vld [vmem:[#allocation2 + $0x4] sm:$0xf]
        %v258 = vld [vmem:[#allocation2 + $0x8] sm:$0xf]
        %v259 = vld [vmem:[#allocation2 + $0xc] sm:$0xf]
        %v260 = vld [vmem:[#allocation2 + $0x10] sm:$0xf]
        %v261 = vld [vmem:[#allocation2 + $0x14] sm:$0xf]
        %v262 = vld [vmem:[#allocation2 + $0x18] sm:$0xf]
        %v263 = vld [vmem:[#allocation2 + $0x1c] sm:$0xf]
        %v264 = vld [vmem:[#allocation2 + $0x20] sm:$0xf]
        %v265 = vld [vmem:[#allocation2 + $0x24] sm:$0xf]
        %v266 = vld [vmem:[#allocation2 + $0x28] sm:$0xf]
        %v267 = vld [vmem:[#allocation2 + $0x2c] sm:$0xf]
        %v268 = vld [vmem:[#allocation2 + $0x30] sm:$0xf]
        %v269 = vld [vmem:[#allocation2 + $0x34] sm:$0xf]
        %v270 = vld [vmem:[#allocation2 + $0x38] sm:$0xf]
        %v271 = vld [vmem:[#allocation2 + $0x3c] sm:$0xf]
        %v272 = vunpack.c.l.bf16 %v256
        %v273 = vunpack.c.l.bf16 %v257
        %v274 = vunpack.c.l.bf16 %v258
        %v275 = vunpack.c.l.bf16 %v259
        %v276 = vunpack.c.l.bf16 %v260
        %v277 = vunpack.c.l.bf16 %v261
        %v278 = vunpack.c.l.bf16 %v262
        %v279 = vunpack.c.l.bf16 %v263
        %v280 = vunpack.c.l.bf16 %v264
        %v281 = vunpack.c.l.bf16 %v265
        %v282 = vunpack.c.l.bf16 %v266
        %v283 = vunpack.c.l.bf16 %v267
        %v284 = vunpack.c.l.bf16 %v268
        %v285 = vunpack.c.l.bf16 %v269
        %v286 = vunpack.c.l.bf16 %v270
        %v287 = vunpack.c.l.bf16 %v271
        %289 = vset.pattern.permute.xlu0 0
        %290 = vperm.xlu0 %289, %v255
        %v291 = vpop.permute.xlu0 %290
        %v293 = vmul.f32 %v254, %v291
        %294 = vmatpush.msra.mxu0 %v287
        %295 = vmatpush.msra.mxu0 %v286
        %296 = vmatpush.msra.mxu0 %v285
        %297 = vmatpush.msra.mxu0 %v284
        %298 = vmatpush.msra.mxu0 %v283
        %299 = vmatpush.msra.mxu0 %v282
        %300 = vmatpush.msra.mxu0 %v281
        %301 = vmatpush.msra.mxu0 %v280
        %302 = vmatpush.msra.mxu0 %v279
        %303 = vmatpush.msra.mxu0 %v278
        %304 = vmatpush.msra.mxu0 %v277
        %305 = vmatpush.msra.mxu0 %v276
        %306 = vmatpush.msra.mxu0 %v275
        %307 = vmatpush.msra.mxu0 %v274
        %308 = vmatpush.msra.mxu0 %v273
        %309 = vmatpush.msra.mxu0 %v272
        %310 = vmatmul.f32.gmra.mxu0 %v293
        %v311 = vpop.f32.mrf.mxu0
        %v312 = vadd.f32 0.0, %v311
        %313 = vdwg.mxu0
        %v314 = vtanh.pop %v312
        %v315 = vadd.f32 %v254, %v314
        %s316 = scalar_lea.vmem [#allocation2], 64
        %v317 = vld [vmem:[%s316] sm:$0xf]
        %v318 = vld [vmem:[%s316 + $0x4] sm:$0xf]
        %v319 = vld [vmem:[%s316 + $0x8] sm:$0xf]
        %v320 = vld [vmem:[%s316 + $0xc] sm:$0xf]
        %v321 = vld [vmem:[%s316 + $0x10] sm:$0xf]
        %v322 = vld [vmem:[%s316 + $0x14] sm:$0xf]
        %v323 = vld [vmem:[%s316 + $0x18] sm:$0xf]
        %v324 = vld [vmem:[%s316 + $0x1c] sm:$0xf]
        %v325 = vld [vmem:[%s316 + $0x20] sm:$0xf]
        %v326 = vld [vmem:[%s316 + $0x24] sm:$0xf]
        %v327 = vld [vmem:[%s316 + $0x28] sm:$0xf]
        %v328 = vld [vmem:[%s316 + $0x2c] sm:$0xf]
        %v329 = vld [vmem:[%s316 + $0x30] sm:$0xf]
        %v330 = vld [vmem:[%s316 + $0x34] sm:$0xf]
        %v331 = vld [vmem:[%s316 + $0x38] sm:$0xf]
        %v332 = vld [vmem:[%s316 + $0x3c] sm:$0xf]
        %v333 = vunpack.c.l.bf16 %v317
        %v334 = vunpack.c.l.bf16 %v318
        %v335 = vunpack.c.l.bf16 %v319
        %v336 = vunpack.c.l.bf16 %v320
        %v337 = vunpack.c.l.bf16 %v321
        %v338 = vunpack.c.l.bf16 %v322
        %v339 = vunpack.c.l.bf16 %v323
        %v340 = vunpack.c.l.bf16 %v324
        %v341 = vunpack.c.l.bf16 %v325
        %v342 = vunpack.c.l.bf16 %v326
        %v343 = vunpack.c.l.bf16 %v327
        %v344 = vunpack.c.l.bf16 %v328
        %v345 = vunpack.c.l.bf16 %v329
        %v346 = vunpack.c.l.bf16 %v330
        %v347 = vunpack.c.l.bf16 %v331
        %v348 = vunpack.c.l.bf16 %v332
        %v349 = vmul.f32 %v315, %v291
        %350 = vmatpush.msra.mxu0 %v348
        %351 = vmatpush.msra.mxu0 %v347
        %352 = vmatpush.msra.mxu0 %v346
        %353 = vmatpush.msra.mxu0 %v345
        %354 = vmatpush.msra.mxu0 %v344
        %355 = vmatpush.msra.mxu0 %v343
        %356 = vmatpush.msra.mxu0 %v342
        %357 = vmatpush.msra.mxu0 %v341
        %358 = vmatpush.msra.mxu0 %v340
        %359 = vmatpush.msra.mxu0 %v339
        %360 = vmatpush.msra.mxu0 %v338
        %361 = vmatpush.msra.mxu0 %v337
        %362 = vmatpush.msra.mxu0 %v336
        %363 = vmatpush.msra.mxu0 %v335
        %364 = vmatpush.msra.mxu0 %v334
        %365 = vmatpush.msra.mxu0 %v333
        %366 = vmatmul.f32.gmra.mxu0 %v349
        %v367 = vpop.f32.mrf.mxu0
        %v368 = vadd.f32 0.0, %v367
        %369 = vdwg.mxu0
        %v370 = vtanh.pop %v368
        %v371 = vadd.f32 %v315, %v370
        %v372 = vld [vmem:[%s3] sm:$0x1]
        %v373 = vld [vmem:[%s4] sm:$0x1]
        %374 = vadd.xlane.f32.xlu0 %v371
        %v375 = vpop.xlane.xlu0 %374
        %v376 = vmul.f32 %v375, 0.03125
        %v377 = vsub.f32 %v371, %v376
        %v378 = vlaneseq
        %v379 = vand.u32 %v378, 127
        %vm380 = vcmp.lt.s32.totalorder %v379, 32
        %v381 = vsel %vm380, 1, 0
        %vm382 = vcmp.eq.s32.totalorder %v381, 1
        %v383 = vsel %vm382, %v377, 0.0
        %v384 = vmul.f32 %v383, %v383
        %385 = vadd.xlane.f32.xlu0 %v384
        %v386 = vpop.xlane.xlu0 %385
        %v387 = vmul.f32 %v386, 0.032258064
        %v388 = vrsqrt.pop %v387
        %v389 = vmul.f32 %v388, %v387
        %v390 = vmul.f32 %v389, %v388
        %v391 = vmul.f32 0.5, %v390
        %v392 = vsub.f32 1.5, %v391
        %v393 = vmul.f32 %v388, %v392
        %v394 = vmul.f32 %v387, %v393
        %vm395 = vcmp.eq.f32.partialorder %v387, inf
        %v396 = vsel %vm395, %v387, %v394
        %vm397 = vcmp.eq.f32.partialorder %v387, 0.0
        %v398 = vand.u32 %v387, 2147483648
        %v399 = vsel %vm397, %v398, %v396
        %v400 = vadd.f32 %v399, 1e-06
        %v401 = vrcp.pop %v400
        %v402 = vmul.f32 %v400, %v401
        %v403 = vsub.f32 1.0, %v402
        %v404 = vmul.f32 %v401, %v403
        %v405 = vadd.f32 %v401, %v404
        %vm406 = vweird.f32 %v400
        %vm407 = vweird.f32 %v401
        %vm408 = vmor %vm406, %vm407
        %v409 = vsel %vm408, %v401, %v405
        %v410 = vand.u32 2147483647, %v400
        %vm411 = vcmp.eq.f32.partialorder %v410, 8.507059e+37
        %v412 = vand.u32 %v400, 2147483648
        %v413 = vor.u32 1.1754944e-38, %v412
        %v414 = vsel %vm411, %v413, %v409
        %v416 = vperm.slane %v372, 0
        %v418 = vmul.f32 %v416, %v377
        %v419 = vmul.f32 %v418, %v414
        %v421 = vperm.slane %v373, 0
        %v423 = vadd.f32 %v419, %v421
        %424 = vst [vmem:[%s245] sm:$0xff] %v423
        %s425 = sand.u32 %s143, 1
        %s426 = scalar_lea.sflag [#allocation4], %s425
        %s427 = sand.u32 %s143, 1
        %s428 = smul.addr %s427, 8
        %s429 = scalar_lea.vmem [#allocation5], %s428
        // Predicated region
        $region45: #{tpu_custom_call.1} parent=39 // pred_check
          %p430 = pneg %p153
        $region46: #{tpu_custom_call.1} parent=39 // pred_check_branch
          %432 = sbr.rel (%p430) target = $region48
        $region47: #{tpu_custom_call.1} parent=39 // pred_region
          %434 = vsyncadd %s426, 0
          %s435 = smul.addr %s20, 8
          %s436 = scalar_lea.hbm %s5, %s435
          %s438 = sshll.u32 %s429, 4
          %s439 = int_to_ptr.vmem [resolvable:$true] %s438
          %s440 = sshll.u32 %s436, 4
          %s441 = int_to_ptr.hbm [resolvable:$true] %s440
          %443 = dma.vmem_to_hbm [thread:$0]  %s439, 128, %s441, %s426
        $region48: #{tpu_custom_call.1} parent=39 // pred_fallthru
          _
      $region40: #{tpu_custom_call.1} parent=5 // pred_fallthru
        _
      %p444 = scmp.le.s32.totalorder 2, %s15
      // Predicated region
      $region49: #{tpu_custom_call.1} parent=5 // pred_check
        %p445 = pneg %p444
      $region50: #{tpu_custom_call.1} parent=5 // pred_check_branch
        %447 = sbr.rel (%p445) target = $region52
      $region51: #{tpu_custom_call.1} parent=5 // pred_region
        %s448 = ssub.s32 %s15, 2
        // Predicated region
        $region53: #{tpu_custom_call.1} parent=51 // pred_check
          %p449 = pneg %p159
        $region54: #{tpu_custom_call.1} parent=51 // pred_check_branch
          %451 = sbr.rel (%p449) target = $region56
        $region55: #{tpu_custom_call.1} parent=51 // pred_region
          %s452 = sand.u32 %s144, 1
          %s453 = scalar_lea.sflag [#allocation4], %s452
          %s454 = sand.u32 %s144, 1
          %s455 = smul.addr %s454, 8
          %s456 = scalar_lea.vmem [#allocation5], %s455
          %458 = dma.done %s453, 128
        $region56: #{tpu_custom_call.1} parent=51 // pred_fallthru
          _
      $region52: #{tpu_custom_call.1} parent=5 // pred_fallthru
        _
    $region6: #{tpu_custom_call.1} parent=1 // loop_footer
      %s19 = sadd.s32 1, %s15
    $region7: #{tpu_custom_call.1} parent=1 // loop_footer_branch
      %14 = sbr.rel target = $region3
    $region8: #{tpu_custom_call.1} parent=1 // loop_exit
      _
    %459 = vsyncpa [#allocation3], 1
    %s460 = scalar_lea.sflag [#allocation3], 1
    %461 = vsyncpa %s460, 1
    %462 = vsyncpa [#allocation4], 1
    %s463 = scalar_lea.sflag [#allocation4], 1
    %464 = vsyncpa %s463, 1

</llo_original>
